<compile_context>
chip_gen: v7x
topology: tpu7x:2x2x1
jax: 0.10.0
libtpu: 0.0.40
codegen_flags: <defaults>
</compile_context>

<pallas_src>
import functools

import jax
import jax.numpy as jnp
from jax.experimental import pallas as pl
from jax.experimental.pallas import tpu as pltpu

N_DICT = 78                      # LSTM input size is 79 = N_DICT + 1
IN_DIM = N_DICT + 1              # 79
HIDDEN = 32
NUM_CLASSES = 2
BATCH = 8
PACK_W = 128                     # lane-dense packed-output width


def lstm_seq_kernel(idx_ref, h0_ref, c0_ref, wf_ref, b_ref,
                    wdd_ref, bdd_ref, out_ref, h_scr, c_scr, *, in_dim):
    t = pl.program_id(0)
    B, H = h_scr.shape
    K = wf_ref.shape[0]                 # padded fused input width (128)
    OUT = out_ref.shape[-1]             # 128

    # --- recurrent state lives in VMEM scratch across the time grid ---------
    @pl.when(t == 0)
    def _():
        h_scr[...] = h0_ref[...]
        c_scr[...] = c0_ref[...]

    h_prev = h_scr[...]                                    # (B, H) f32
    c_prev = c_scr[...]                                    # (B, H) f32

    # --- fused MXU input: [h | onehot(token) | pad] in one (B, K) tile ------
    # Clamp ids like jnp.take (reference semantics); onehot lanes never
    # overlap the h lanes.
    idx = jnp.clip(idx_ref[...], 0, in_dim - 1)            # (B, 1) int32
    lane = jax.lax.broadcasted_iota(jnp.int32, (B, K), 1)
    onehot = (lane == (idx + H)).astype(jnp.float32)       # (B, K)
    h_wide = jnp.concatenate(
        [h_prev, jnp.zeros((B, K - H), jnp.float32)], axis=-1)
    xh = (h_wide + onehot).astype(jnp.bfloat16)            # bf16 MXU operand

    # --- single MXU pass (bf16 inputs, f32 accumulate) -----------------------
    gates = jnp.dot(xh, wf_ref[...],
                    preferred_element_type=jnp.float32) + b_ref[...]  # (B,4H)

    # --- ONE full-vreg EUP pass; g gate recovered as 2*sigmoid(2z) - 1 -------
    sig = jax.nn.sigmoid(gates)                            # (B, 4H) f32
    # PyTorch gate order: input | forget | cell(g) | output.
    # Sub-128 lane slices are XLU selects; accepted (nothing else competes).
    i_g = sig[:, 0 * H:1 * H]
    f_g = sig[:, 1 * H:2 * H]
    g_g = 2.0 * sig[:, 2 * H:3 * H] - 1.0                  # == tanh(z_g)
    o_g = sig[:, 3 * H:4 * H]

    c_new = f_g * c_prev + i_g * g_g
    h_new = o_g * jnp.tanh(c_new)

    h_scr[...] = h_new
    c_scr[...] = c_new

    # --- 2-class decoder + log_softmax as a logit difference (VPU/XLU) -------
    # d = logit_1 - logit_0 ; log_softmax = (-softplus(d), d - softplus(d))
    d = (jnp.sum(h_new * wdd_ref[...], axis=-1, keepdims=True)
         + bdd_ref[...])                                   # (B, 1)
    sp = jnp.maximum(d, 0.0) + jnp.log1p(jnp.exp(-jnp.abs(d)))
    lp = jnp.concatenate([-sp, d - sp], axis=-1)           # (B, 2)

    # --- one lane-dense unmasked (B, 128) store per step ----------------------
    pad = OUT - 2 * H - 2
    out_ref[...] = jnp.concatenate(
        [h_new, c_new, lp, jnp.zeros((B, pad), jnp.float32)], axis=-1)


def lstm_sequence(x_idx_seq, hidden, params):
    """Run T LSTM steps in one pallas_call.

    x_idx_seq: (T, B) int32 token ids; hidden: (h0, c0) each (1, B, H).
    Returns (pred_seq (T, B, 2) log-probs, (h_T, c_T) each (1, B, H)).
    """
    h0, c0 = hidden
    T, B = x_idx_seq.shape
    H = h0.shape[-1]
    G = 4 * H
    assert 2 * H + NUM_CLASSES <= PACK_W

    kernel = functools.partial(lstm_seq_kernel, in_dim=IN_DIM)

    packed = pl.pallas_call(
        kernel,
        out_shape=jax.ShapeDtypeStruct((T, B, PACK_W), jnp.float32),
        grid=(T,),
        in_specs=[
            # per-step token ids (leading time dim squeezed out)
            pl.BlockSpec((None, B, 1), lambda t: (t, 0, 0)),
            # initial state: constant block -> stays resident
            pl.BlockSpec((B, H), lambda t: (0, 0)),
            pl.BlockSpec((B, H), lambda t: (0, 0)),
            # fused weights / biases: constant block -> DMA'd once, resident
            pl.BlockSpec((PACK_W, G), lambda t: (0, 0)),
            pl.BlockSpec((1, G), lambda t: (0, 0)),
            pl.BlockSpec((1, H), lambda t: (0, 0)),
            pl.BlockSpec((1, 1), lambda t: (0, 0)),
        ],
        out_specs=pl.BlockSpec((None, B, PACK_W), lambda t: (t, 0, 0)),
        scratch_shapes=[pltpu.VMEM((B, H), jnp.float32),   # h carry
                        pltpu.VMEM((B, H), jnp.float32)],  # c carry
        compiler_params=pltpu.CompilerParams(
            dimension_semantics=("arbitrary",)),           # time recurrence
    )(
        x_idx_seq.astype(jnp.int32).reshape(T, B, 1),
        h0[0].astype(jnp.float32),
        c0[0].astype(jnp.float32),
        params["w_fused"],
        params["b_gates"],
        params["w_dec_diff"],
        params["b_dec_diff"],
    )

    pred_seq = packed[:, :, 2 * H:2 * H + NUM_CLASSES]
    h_T = packed[-1, :, 0:H]
    c_T = packed[-1, :, H:2 * H]
    return pred_seq, (h_T[None], c_T[None])


def baseline_forward(x_idx, hidden, params):
    """Single-step forward matching the PyTorch module (seq_len = 1)."""
    pred_seq, hidden_new = lstm_sequence(x_idx[None, :], hidden, params)
    return pred_seq[0], hidden_new


def make_kernel_params(p):
    """Derive fused kernel operands from the raw (PyTorch-layout) params."""
    hp = jax.lax.Precision.HIGHEST
    H = p["w_hh"].shape[1]
    in_dim = p["w_ih"].shape[1]
    G = 4 * H
    K = ((H + in_dim + 127) // 128) * 128          # padded fused input width

    # Fold the embedding lookup into the gate matmul: emb @ W_ih^T.
    e_w = jnp.dot(p["emb"], p["w_ih"].T, precision=hp)        # (in_dim, 4H)
    w_fused = jnp.zeros((K, G), jnp.float32)
    w_fused = w_fused.at[:H].set(p["w_hh"].T)                  # rows 0:H
    w_fused = w_fused.at[H:H + in_dim].set(e_w)                # rows H:H+79
    b_gates = (p["b_ih"] + p["b_hh"])[None, :]                 # (1, 4H)

    # Single-sigmoid trick: tanh(z) = 2*sigmoid(2z) - 1, so pre-double the
    # g-gate (cell-candidate) columns/bias; kernel only applies sigmoid.
    w_fused = w_fused.at[:, 2 * H:3 * H].multiply(2.0)
    b_gates = b_gates.at[:, 2 * H:3 * H].multiply(2.0)

    w_dec_diff = (p["w_dec"][1] - p["w_dec"][0])[None, :]      # (1, H)
    b_dec_diff = (p["b_dec"][1] - p["b_dec"][0]).reshape(1, 1)  # (1, 1)

    return {"w_fused": w_fused.astype(jnp.bfloat16),           # bf16 MXU tile
            "b_gates": b_gates.astype(jnp.float32),
            "w_dec_diff": w_dec_diff.astype(jnp.float32),
            "b_dec_diff": b_dec_diff.astype(jnp.float32)}


def init_params(key, hidden_size=HIDDEN, num_classes=NUM_CLASSES):
    ks = jax.random.split(key, 7)
    bound = 1.0 / (hidden_size ** 0.5)

    emb = jax.random.normal(ks[0], (IN_DIM, IN_DIM), jnp.float32)
    w_ih = jax.random.uniform(ks[1], (4 * hidden_size, IN_DIM),
                              jnp.float32, -bound, bound)
    w_hh = jax.random.uniform(ks[2], (4 * hidden_size, hidden_size),
                              jnp.float32, -bound, bound)
    b_ih = jax.random.uniform(ks[3], (4 * hidden_size,),
                              jnp.float32, -bound, bound)
    b_hh = jax.random.uniform(ks[4], (4 * hidden_size,),
                              jnp.float32, -bound, bound)
    w_dec = jax.random.uniform(ks[5], (num_classes, hidden_size),
                               jnp.float32, -bound, bound)
    b_dec = jax.random.uniform(ks[6], (num_classes,),
                               jnp.float32, -bound, bound)

    params = {"emb": emb, "w_ih": w_ih, "w_hh": w_hh,
              "b_ih": b_ih, "b_hh": b_hh, "w_dec": w_dec, "b_dec": b_dec}
    params.update(make_kernel_params(params))
    return params


def reference_forward(x_idx, hidden, params):
    """Pure-JAX reference matching the PyTorch module forward exactly."""
    hp = jax.lax.Precision.HIGHEST
    h0, c0 = hidden
    H = h0.shape[-1]
    x_emb = jnp.take(params["emb"], x_idx, axis=0)
    gates = (jnp.dot(x_emb, params["w_ih"].T, precision=hp) + params["b_ih"]
             + jnp.dot(h0[0], params["w_hh"].T, precision=hp) + params["b_hh"])
    i = jax.nn.sigmoid(gates[:, 0 * H:1 * H])
    f = jax.nn.sigmoid(gates[:, 1 * H:2 * H])
    g = jnp.tanh(gates[:, 2 * H:3 * H])
    o = jax.nn.sigmoid(gates[:, 3 * H:4 * H])
    c_new = f * c0[0] + i * g
    h_new = o * jnp.tanh(c_new)
    logits = jnp.dot(h_new, params["w_dec"].T, precision=hp) + params["b_dec"]
    pred = jax.nn.log_softmax(logits, axis=-1)
    return pred, (h_new[None], c_new[None])


def reference_sequence(x_seq, hidden, params):
    preds = []
    h = hidden
    for t in range(x_seq.shape[0]):
        p, h = reference_forward(x_seq[t], h, params)
        preds.append(p)
    return jnp.stack(preds), h


if __name__ == "__main__":
    key = jax.random.PRNGKey(0)
    k_param, k_x, k_h, k_c, k_seq = jax.random.split(key, 5)

    params = init_params(k_param)

    x_idx = jax.random.randint(k_x, (BATCH,), 0, N_DICT + 1, jnp.int32)
    # random_init=True hidden so the W_hh / c0 paths are actually exercised
    h0 = jax.random.normal(k_h, (1, BATCH, HIDDEN), jnp.float32)
    c0 = jax.random.normal(k_c, (1, BATCH, HIDDEN), jnp.float32)

    # --- single-step forward (module semantics, T = 1) ----------------------
    fwd = jax.jit(baseline_forward)
    pred, (h_new, c_new) = fwd(x_idx, (h0, c0), params)
    jax.block_until_ready((pred, h_new, c_new))

    assert pred.shape == (BATCH, NUM_CLASSES)
    assert h_new.shape == (1, BATCH, HIDDEN)
    assert c_new.shape == (1, BATCH, HIDDEN)
    # log_softmax rows must sum to 1 in prob space
    assert jnp.allclose(jnp.sum(jnp.exp(pred), axis=-1), 1.0, atol=1e-5)

    # numerical check against the f32-HIGHEST pure-JAX reference
    # (bf16 MXU operands -> slightly looser tolerance than the f32 kernel)
    pred_r, (h_r, c_r) = reference_forward(x_idx, (h0, c0), params)
    assert jnp.allclose(pred, pred_r, atol=1e-2, rtol=1e-2)
    assert jnp.allclose(h_new, h_r, atol=1e-2, rtol=1e-2)
    assert jnp.allclose(c_new, c_r, atol=1e-2, rtol=1e-2)

    # --- multi-step decode-loop path: T steps in ONE pallas_call -------------
    T = 12
    x_seq = jax.random.randint(k_seq, (T, BATCH), 0, N_DICT + 1, jnp.int32)
    seq_fwd = jax.jit(lstm_sequence)
    pred_seq, (h_T, c_T) = seq_fwd(x_seq, (h0, c0), params)
    jax.block_until_ready((pred_seq, h_T, c_T))

    pred_seq_r, (h_T_r, c_T_r) = reference_sequence(x_seq, (h0, c0), params)
    assert pred_seq.shape == (T, BATCH, NUM_CLASSES)
    assert jnp.allclose(jnp.sum(jnp.exp(pred_seq), axis=-1), 1.0, atol=1e-5)
    assert jnp.allclose(pred_seq, pred_seq_r, atol=2e-2, rtol=2e-2)
    assert jnp.allclose(h_T, h_T_r, atol=2e-2, rtol=2e-2)
    assert jnp.allclose(c_T, c_T_r, atol=2e-2, rtol=2e-2)

    print("KERNEL_OK")
</pallas_src>

<mosaic_0001>
module attributes {stable_mosaic.version = 11 : i64} {
  func.func @lstm_seq_kernel(%arg0: i32, %arg1: memref<1x8x1xi32, #tpu.memory_space<vmem>>, %arg2: memref<8x32xf32, #tpu.memory_space<vmem>>, %arg3: memref<8x32xf32, #tpu.memory_space<vmem>>, %arg4: memref<128x128xbf16, #tpu.memory_space<vmem>>, %arg5: memref<1x128xf32, #tpu.memory_space<vmem>>, %arg6: memref<1x32xf32, #tpu.memory_space<vmem>>, %arg7: memref<1x1xf32, #tpu.memory_space<vmem>>, %arg8: memref<1x8x128xf32, #tpu.memory_space<vmem>>, %arg9: memref<8x32xf32, #tpu.memory_space<vmem>>, %arg10: memref<8x32xf32, #tpu.memory_space<vmem>>) attributes {dimension_semantics = [#tpu.dimension_semantics<arbitrary>], iteration_bounds = array<i64: 1>, scalar_prefetch = 0 : i64, scratch_operands = 2 : i64, tpu.core_type = #tpu.core_type<tc>, window_params = [{transform_indices = @transform_0, window_bounds = array<i64: 1, 8, 1>}, {pipeline_mode = #tpu.pipeline_mode<synchronous>, transform_indices = @transform_1, window_bounds = array<i64: 8, 32>}, {pipeline_mode = #tpu.pipeline_mode<synchronous>, transform_indices = @transform_2, window_bounds = array<i64: 8, 32>}, {pipeline_mode = #tpu.pipeline_mode<synchronous>, transform_indices = @transform_3, window_bounds = array<i64: 128, 128>}, {pipeline_mode = #tpu.pipeline_mode<synchronous>, transform_indices = @transform_4, window_bounds = array<i64: 1, 128>}, {pipeline_mode = #tpu.pipeline_mode<synchronous>, transform_indices = @transform_5, window_bounds = array<i64: 1, 32>}, {pipeline_mode = #tpu.pipeline_mode<synchronous>, transform_indices = @transform_6, window_bounds = array<i64: 1, 1>}, {transform_indices = @transform_7, window_bounds = array<i64: 1, 8, 128>}]} {
    %c0_i32 = arith.constant 0 : i32
    %0 = arith.cmpi eq, %arg0, %c0_i32 : i32
    %1 = arith.extui %0 : i1 to i32
    %c0_i32_0 = arith.constant 0 : i32
    %2 = arith.cmpi ne, %1, %c0_i32_0 : i32
    scf.if %2 {
      %c0_32 = arith.constant 0 : index
      %c0_33 = arith.constant 0 : index
      %72 = vector.load %arg2[%c0_32, %c0_33] : memref<8x32xf32, #tpu.memory_space<vmem>>, vector<8x32xf32>
      %c0_34 = arith.constant 0 : index
      %c0_35 = arith.constant 0 : index
      %73 = vector.load %arg9[%c0_34, %c0_35] : memref<8x32xf32, #tpu.memory_space<vmem>>, vector<8x32xf32>
      tpu.vector_store %arg9[%c0_34, %c0_35], %72 {strides = array<i32>} : memref<8x32xf32, #tpu.memory_space<vmem>>, vector<8x32xf32>,
      %c0_36 = arith.constant 0 : index
      %c0_37 = arith.constant 0 : index
      %74 = vector.load %arg3[%c0_36, %c0_37] : memref<8x32xf32, #tpu.memory_space<vmem>>, vector<8x32xf32>
      %c0_38 = arith.constant 0 : index
      %c0_39 = arith.constant 0 : index
      %75 = vector.load %arg10[%c0_38, %c0_39] : memref<8x32xf32, #tpu.memory_space<vmem>>, vector<8x32xf32>
      tpu.vector_store %arg10[%c0_38, %c0_39], %74 {strides = array<i32>} : memref<8x32xf32, #tpu.memory_space<vmem>>, vector<8x32xf32>,
    } else {
    }
    %c0 = arith.constant 0 : index
    %c0_1 = arith.constant 0 : index
    %3 = vector.load %arg9[%c0, %c0_1] : memref<8x32xf32, #tpu.memory_space<vmem>>, vector<8x32xf32>
    %c0_2 = arith.constant 0 : index
    %c0_3 = arith.constant 0 : index
    %4 = vector.load %arg10[%c0_2, %c0_3] : memref<8x32xf32, #tpu.memory_space<vmem>>, vector<8x32xf32>
    %c0_4 = arith.constant 0 : index
    %c0_5 = arith.constant 0 : index
    %c0_6 = arith.constant 0 : index
    %5 = vector.load %arg1[%c0_4, %c0_5, %c0_6] : memref<1x8x1xi32, #tpu.memory_space<vmem>>, vector<1x8x1xi32>
    %6 = vector.shape_cast %5 : vector<1x8x1xi32> to vector<8x1xi32>
    %c0_i32_7 = arith.constant 0 : i32
    %c78_i32 = arith.constant 78 : i32
    %7 = vector.broadcast %c0_i32_7 : i32 to vector<8x1xi32>
    %8 = arith.maxsi %7, %6 : vector<8x1xi32>
    %9 = vector.broadcast %c78_i32 : i32 to vector<8x1xi32>
    %10 = arith.minsi %9, %8 : vector<8x1xi32>
    %11 = tpu.iota {dimensions = array<i32: 1>} : vector<8x128xi32>
    %c32_i32 = arith.constant 32 : i32
    %12 = vector.broadcast %c32_i32 : i32 to vector<8x1xi32>
    %13 = arith.addi %10, %12 : vector<8x1xi32>
    %14 = vector.broadcast %13 : vector<8x1xi32> to vector<8x128xi32>
    %15 = arith.cmpi eq, %11, %14 : vector<8x128xi32>
    %16 = arith.extui %15 : vector<8x128xi1> to vector<8x128xi32>
    %17 = arith.sitofp %16 : vector<8x128xi32> to vector<8x128xf32>
    %cst = arith.constant 0.000000e+00 : f32
    %18 = vector.broadcast %cst : f32 to vector<8x96xf32>
    %19 = tpu.concatenate %3, %18 in 1 : vector<8x32xf32>, vector<8x96xf32> -> vector<8x128xf32>
    %20 = arith.addf %19, %17 : vector<8x128xf32>
    %21 = arith.truncf %20 : vector<8x128xf32> to vector<8x128xbf16>
    %c0_8 = arith.constant 0 : index
    %c0_9 = arith.constant 0 : index
    %22 = vector.load %arg4[%c0_8, %c0_9] : memref<128x128xbf16, #tpu.memory_space<vmem>>, vector<128x128xbf16>
    %cst_10 = arith.constant dense<0.000000e+00> : vector<8x128xf32>
    %23 = tpu.matmul %21, %22, %cst_10 {dimension_numbers = #tpu.dot_dimension_numbers<[1], [0], [0], [1], [0, 0, 1, 1], [], []>} : vector<8x128xbf16>, vector<128x128xbf16>, vector<8x128xf32> -> vector<8x128xf32>
    %c0_11 = arith.constant 0 : index
    %c0_12 = arith.constant 0 : index
    %24 = vector.load %arg5[%c0_11, %c0_12] : memref<1x128xf32, #tpu.memory_space<vmem>>, vector<1x128xf32>
    %25 = vector.broadcast %24 : vector<1x128xf32> to vector<8x128xf32>
    %26 = arith.addf %23, %25 : vector<8x128xf32>
    %27 = arith.negf %26 : vector<8x128xf32>
    %28 = math.exp %27 : vector<8x128xf32>
    %cst_13 = arith.constant 1.000000e+00 : f32
    %29 = vector.broadcast %cst_13 : f32 to vector<8x128xf32>
    %30 = arith.addf %29, %28 : vector<8x128xf32>
    %31 = arith.divf %29, %30 : vector<8x128xf32>
    %32 = vector.extract_strided_slice %31 {offsets = [0, 0], sizes = [8, 32], strides = [1, 1]} : vector<8x128xf32> to vector<8x32xf32>
    %33 = vector.extract_strided_slice %31 {offsets = [0, 32], sizes = [8, 32], strides = [1, 1]} : vector<8x128xf32> to vector<8x32xf32>
    %34 = vector.extract_strided_slice %31 {offsets = [0, 64], sizes = [8, 32], strides = [1, 1]} : vector<8x128xf32> to vector<8x32xf32>
    %cst_14 = arith.constant 2.000000e+00 : f32
    %35 = vector.broadcast %cst_14 : f32 to vector<8x32xf32>
    %36 = arith.mulf %35, %34 : vector<8x32xf32>
    %cst_15 = arith.constant 1.000000e+00 : f32
    %37 = vector.broadcast %cst_15 : f32 to vector<8x32xf32>
    %38 = arith.subf %36, %37 : vector<8x32xf32>
    %39 = vector.extract_strided_slice %31 {offsets = [0, 96], sizes = [8, 32], strides = [1, 1]} : vector<8x128xf32> to vector<8x32xf32>
    %40 = arith.mulf %33, %4 : vector<8x32xf32>
    %41 = arith.mulf %32, %38 : vector<8x32xf32>
    %42 = arith.addf %40, %41 : vector<8x32xf32>
    %43 = math.tanh %42 : vector<8x32xf32>
    %44 = arith.mulf %39, %43 : vector<8x32xf32>
    %c0_16 = arith.constant 0 : index
    %c0_17 = arith.constant 0 : index
    %45 = vector.load %arg9[%c0_16, %c0_17] : memref<8x32xf32, #tpu.memory_space<vmem>>, vector<8x32xf32>
    tpu.vector_store %arg9[%c0_16, %c0_17], %44 {strides = array<i32>} : memref<8x32xf32, #tpu.memory_space<vmem>>, vector<8x32xf32>,
    %c0_18 = arith.constant 0 : index
    %c0_19 = arith.constant 0 : index
    %46 = vector.load %arg10[%c0_18, %c0_19] : memref<8x32xf32, #tpu.memory_space<vmem>>, vector<8x32xf32>
    tpu.vector_store %arg10[%c0_18, %c0_19], %42 {strides = array<i32>} : memref<8x32xf32, #tpu.memory_space<vmem>>, vector<8x32xf32>,
    %c0_20 = arith.constant 0 : index
    %c0_21 = arith.constant 0 : index
    %47 = vector.load %arg6[%c0_20, %c0_21] : memref<1x32xf32, #tpu.memory_space<vmem>>, vector<1x32xf32>
    %48 = vector.broadcast %47 : vector<1x32xf32> to vector<8x32xf32>
    %49 = arith.mulf %44, %48 : vector<8x32xf32>
    %cst_22 = arith.constant dense<0.000000e+00> : vector<8xf32>
    %50 = vector.multi_reduction <add>, %49, %cst_22 [1] : vector<8x32xf32> to vector<8xf32>
    %51 = vector.shape_cast %50 : vector<8xf32> to vector<8x1xf32>
    %c0_23 = arith.constant 0 : index
    %c0_24 = arith.constant 0 : index
    %52 = vector.load %arg7[%c0_23, %c0_24] : memref<1x1xf32, #tpu.memory_space<vmem>>, vector<1x1xf32>
    %53 = vector.broadcast %52 : vector<1x1xf32> to vector<8x1xf32>
    %54 = arith.addf %51, %53 : vector<8x1xf32>
    %cst_25 = arith.constant 0.000000e+00 : f32
    %55 = vector.broadcast %cst_25 : f32 to vector<8x1xf32>
    %56 = arith.maximumf %54, %55 : vector<8x1xf32>
    %57 = math.absf %54 : vector<8x1xf32>
    %cst_26 = arith.constant 0.000000e+00 : f32
    %58 = vector.broadcast %cst_26 : f32 to vector<8x1xf32>
    %59 = arith.subf %58, %57 : vector<8x1xf32>
    %60 = math.exp %59 : vector<8x1xf32>
    %61 = math.log1p %60 : vector<8x1xf32>
    %62 = arith.addf %56, %61 : vector<8x1xf32>
    %cst_27 = arith.constant 0.000000e+00 : f32
    %63 = vector.broadcast %cst_27 : f32 to vector<8x1xf32>
    %64 = arith.subf %63, %62 : vector<8x1xf32>
    %65 = arith.subf %54, %62 : vector<8x1xf32>
    %66 = tpu.concatenate %64, %65 in 1 : vector<8x1xf32>, vector<8x1xf32> -> vector<8x2xf32>
    %cst_28 = arith.constant 0.000000e+00 : f32
    %67 = vector.broadcast %cst_28 : f32 to vector<8x62xf32>
    %68 = tpu.concatenate %44, %42, %66, %67 in 1 : vector<8x32xf32>, vector<8x32xf32>, vector<8x2xf32>, vector<8x62xf32> -> vector<8x128xf32>
    %c0_29 = arith.constant 0 : index
    %c0_30 = arith.constant 0 : index
    %c0_31 = arith.constant 0 : index
    %69 = vector.load %arg8[%c0_29, %c0_30, %c0_31] : memref<1x8x128xf32, #tpu.memory_space<vmem>>, vector<1x8x128xf32>
    %70 = vector.shape_cast %69 : vector<1x8x128xf32> to vector<8x128xf32>
    %71 = vector.shape_cast %68 : vector<8x128xf32> to vector<1x8x128xf32>
    tpu.vector_store %arg8[%c0_29, %c0_30, %c0_31], %71 {strides = array<i32>} : memref<1x8x128xf32, #tpu.memory_space<vmem>>, vector<1x8x128xf32>,
    return
  }
  func.func @transform_0(%arg0: i32) -> (i32, i32, i32) {
    %c0_i32 = arith.constant 0 : i32
    %c0_i32_0 = arith.constant 0 : i32
    %c0_i32_1 = arith.constant 0 : i32
    return %arg0, %c0_i32, %c0_i32_0 : i32, i32, i32
  }
  func.func @transform_1(%arg0: i32) -> (i32, i32) {
    %c0_i32 = arith.constant 0 : i32
    %c0_i32_0 = arith.constant 0 : i32
    %c0_i32_1 = arith.constant 0 : i32
    return %c0_i32, %c0_i32_0 : i32, i32
  }
  func.func @transform_2(%arg0: i32) -> (i32, i32) {
    %c0_i32 = arith.constant 0 : i32
    %c0_i32_0 = arith.constant 0 : i32
    %c0_i32_1 = arith.constant 0 : i32
    return %c0_i32, %c0_i32_0 : i32, i32
  }
  func.func @transform_3(%arg0: i32) -> (i32, i32) {
    %c0_i32 = arith.constant 0 : i32
    %c0_i32_0 = arith.constant 0 : i32
    %c0_i32_1 = arith.constant 0 : i32
    return %c0_i32, %c0_i32_0 : i32, i32
  }
  func.func @transform_4(%arg0: i32) -> (i32, i32) {
    %c0_i32 = arith.constant 0 : i32
    %c0_i32_0 = arith.constant 0 : i32
    %c0_i32_1 = arith.constant 0 : i32
    return %c0_i32, %c0_i32_0 : i32, i32
  }
  func.func @transform_5(%arg0: i32) -> (i32, i32) {
    %c0_i32 = arith.constant 0 : i32
    %c0_i32_0 = arith.constant 0 : i32
    %c0_i32_1 = arith.constant 0 : i32
    return %c0_i32, %c0_i32_0 : i32, i32
  }
  func.func @transform_6(%arg0: i32) -> (i32, i32) {
    %c0_i32 = arith.constant 0 : i32
    %c0_i32_0 = arith.constant 0 : i32
    %c0_i32_1 = arith.constant 0 : i32
    return %c0_i32, %c0_i32_0 : i32, i32
  }
  func.func @transform_7(%arg0: i32) -> (i32, i32, i32) {
    %c0_i32 = arith.constant 0 : i32
    %c0_i32_0 = arith.constant 0 : i32
    %c0_i32_1 = arith.constant 0 : i32
    return %arg0, %c0_i32, %c0_i32_0 : i32, i32, i32
  }
}

</mosaic_0001>

<llo_original>
// kernel: baseline_forward.1
$region0: #{baseline_forward.1}
  #allocation0 [shape = 'u32[]', space=smem, size = 0x4, offset = 0x4, fixed_abs, tag = 'smem constant byte address 0x4 - core index']
  #allocation1 [shape = 'u32[144,128]{1,0:T(1,128)}', space=vmem, size = 0x12000, scoped, tag = 'internal scratch']
  #allocation2 [shape = 'f32[8,32]{1,0:T(8,128)}', space=vmem, size = 0x1000, scoped, tag = 'scratch operand']
  #allocation3 [shape = 'f32[8,32]{1,0:T(8,128)}', space=vmem, size = 0x1000, scoped, tag = 'scratch operand']
  #allocation4 [shape = 'f32[1,1]{1,0:T(1,128)S(1)}', space=vmem, size = 0x200, scoped, tag = 'scoped memory for baseline_forward.1']
  %s0 = inlined_call_operand.vmem [shape: s32[1,8,1], index: 0, kind: input, shape index: {}]
  %s1 = inlined_call_operand.vmem [shape: f32[8,32], index: 1, kind: input, shape index: {}]
  %s2 = inlined_call_operand.vmem [shape: f32[8,32], index: 2, kind: input, shape index: {}]
  %s3 = inlined_call_operand.hbm [shape: bf16[128,128], index: 3, kind: input, shape index: {}]
  %s4 = inlined_call_operand.vmem [shape: f32[1,128], index: 4, kind: input, shape index: {}]
  %s5 = inlined_call_operand.vmem [shape: f32[1,32], index: 5, kind: input, shape index: {}]
  %s6 = inlined_call_operand.<no memory space> [shape: f32[1,1], index: 6, kind: input, shape index: {}]
  %s7 = inlined_call_operand.vmem [shape: f32[1,8,128], index: 7, kind: output, shape index: {}]
  %s8 = sld [smem:[#allocation0]]
  $region46: #{baseline_forward.1} parent=0
    _
  %s10 = ssub.s32 1, %s8
  %s11 = scalar_select 0, %s10, %s8
  %v12 = vstv %s6
  %13 = vst [vmem:[#allocation4] sm:$0x1] %v12
  $region1: #{baseline_forward.1} parent=0
    #allocation5 [shape = 'u8[32768]{0}', space=vmem, size = 0x8000, scoped, tag = 'input window, operand 3, single buffered']
    #allocation6 [shape = 's32[1]{0}', space=sflag, size = 0x4, scoped, tag = 'scoped memory for baseline_forward.1']
    %14 = vsyncpa [#allocation6], 0
    // Predicated region
    $region2: #{baseline_forward.1} parent=1 // pred_check
      _
    $region3: #{baseline_forward.1} parent=1 // pred_check_branch
      %16 = sbr.rel (0) target = $region5
    $region4: #{baseline_forward.1} parent=1 // pred_region
      _
    $region5: #{baseline_forward.1} parent=1 // pred_fallthru
      _
    // Predicated region
    $region6: #{baseline_forward.1} parent=1 // pred_check
      _
    $region7: #{baseline_forward.1} parent=1 // pred_check_branch
      %18 = sbr.rel (0) target = $region9
    $region8: #{baseline_forward.1} parent=1 // pred_region
      _
    $region9: #{baseline_forward.1} parent=1 // pred_fallthru
      _
    // Predicated region
    $region10: #{baseline_forward.1} parent=1 // pred_check
      _
    $region11: #{baseline_forward.1} parent=1 // pred_check_branch
      %20 = sbr.rel (0) target = $region13
    $region12: #{baseline_forward.1} parent=1 // pred_region
      _
    $region13: #{baseline_forward.1} parent=1 // pred_fallthru
      _
    // Predicated region
    $region14: #{baseline_forward.1} parent=1 // pred_check
      _
    $region15: #{baseline_forward.1} parent=1 // pred_check_branch
      %22 = sbr.rel (0) target = $region17
    $region16: #{baseline_forward.1} parent=1 // pred_region
      %s24 = ssub.s32 1024, 1024
      %25 = vsyncadd [#allocation6], %s24
      %s26 = sshll.u32 [#allocation5], 4
      %s27 = int_to_ptr.vmem [resolvable:$true] %s26
      %32 = dma.hbm_to_vmem [thread:$0]  %s3, 1024, %s27, [#allocation6], 64, 64, 4
    $region17: #{baseline_forward.1} parent=1 // pred_fallthru
      _
    // Predicated region
    $region18: #{baseline_forward.1} parent=1 // pred_check
      _
    $region19: #{baseline_forward.1} parent=1 // pred_check_branch
      %34 = sbr.rel (0) target = $region21
    $region20: #{baseline_forward.1} parent=1 // pred_region
      _
    $region21: #{baseline_forward.1} parent=1 // pred_fallthru
      _
    // Predicated region
    $region22: #{baseline_forward.1} parent=1 // pred_check
      _
    $region23: #{baseline_forward.1} parent=1 // pred_check_branch
      %36 = sbr.rel (0) target = $region25
    $region24: #{baseline_forward.1} parent=1 // pred_region
      _
    $region25: #{baseline_forward.1} parent=1 // pred_fallthru
      _
    // Predicated region
    $region26: #{baseline_forward.1} parent=1 // pred_check
      _
    $region27: #{baseline_forward.1} parent=1 // pred_check_branch
      %38 = sbr.rel (0) target = $region29
    $region28: #{baseline_forward.1} parent=1 // pred_region
      _
    $region29: #{baseline_forward.1} parent=1 // pred_fallthru
      _
    // Predicated region
    $region30: #{baseline_forward.1} parent=1 // pred_check
      _
    $region31: #{baseline_forward.1} parent=1 // pred_check_branch
      %40 = sbr.rel (0) target = $region33
    $region32: #{baseline_forward.1} parent=1 // pred_region
      %41 = dma.done [#allocation6], 1024
    $region33: #{baseline_forward.1} parent=1 // pred_fallthru
      _
    %p43 = scmp.eq.s32.totalorder 0, 0
    // Predicated region
    $region34: #{baseline_forward.1} parent=1 // pred_check
      %p44 = pneg %p43
    $region35: #{baseline_forward.1} parent=1 // pred_check_branch
      %46 = sbr.rel (%p44) target = $region37
    $region36: #{baseline_forward.1} parent=1 // pred_region
      %v47 = vld [vmem:[%s1] sm:$0xff]
      %vm48 = vcmask 261120
      %49 = vst.msk [vmem:[#allocation2] sm:$0xff] %vm48, %v47
      %v50 = vld [vmem:[%s2] sm:$0xff]
      %51 = vst.msk [vmem:[#allocation3] sm:$0xff] %vm48, %v50
    $region37: #{baseline_forward.1} parent=1 // pred_fallthru
      _
    %v52 = vld [vmem:[#allocation2] sm:$0xff]
    %v53 = vld [vmem:[#allocation3] sm:$0xff]
    %v54 = vld [vmem:[%s0] sm:$0xff]
    %vm55 = vcmp.gt.s32.totalorder %v54, 0
    %v56 = vsel %vm55, %v54, 0
    %vm57 = vcmp.lt.s32.totalorder %v56, 78
    %v58 = vsel %vm57, %v56, 78
    %v59 = vlaneseq
    %v60 = vand.u32 %v59, 127
    %v61 = vadd.s32 %v58, 32
    %62 = vset.pattern.permute.xlu0 0
    %63 = vperm.xlu0 %62, %v61
    %v64 = vpop.permute.xlu0 %63
    %vm65 = vcmp.eq.s32.totalorder %v60, %v64
    %v66 = vsel %vm65, 1, 0
    %v67 = vcvt.s32.f32 %v66
    %vm68 = vcmask 261120
    %v69 = vsel %vm68, %v52, 0.0
    %v70 = vadd.f32 %v69, %v67
    %v71 = vpack.c.bf16 %v70, %v70
    %v72 = vld [vmem:[#allocation5] sm:$0xf]
    %v73 = vld [vmem:[#allocation5 + $0x4] sm:$0xf]
    %v74 = vld [vmem:[#allocation5 + $0x8] sm:$0xf]
    %v75 = vld [vmem:[#allocation5 + $0xc] sm:$0xf]
    %v76 = vld [vmem:[#allocation5 + $0x10] sm:$0xf]
    %v77 = vld [vmem:[#allocation5 + $0x14] sm:$0xf]
    %v78 = vld [vmem:[#allocation5 + $0x18] sm:$0xf]
    %v79 = vld [vmem:[#allocation5 + $0x1c] sm:$0xf]
    %v80 = vld [vmem:[#allocation5 + $0x20] sm:$0xf]
    %v81 = vld [vmem:[#allocation5 + $0x24] sm:$0xf]
    %v82 = vld [vmem:[#allocation5 + $0x28] sm:$0xf]
    %v83 = vld [vmem:[#allocation5 + $0x2c] sm:$0xf]
    %v84 = vld [vmem:[#allocation5 + $0x30] sm:$0xf]
    %v85 = vld [vmem:[#allocation5 + $0x34] sm:$0xf]
    %v86 = vld [vmem:[#allocation5 + $0x38] sm:$0xf]
    %v87 = vld [vmem:[#allocation5 + $0x3c] sm:$0xf]
    %v88 = vld [vmem:[%s4] sm:$0x1]
    %v90 = vlaneseq
    %v91 = vshrl.u32 %v90, 7
    %v92 = vsub.s32 0, %v91
    %v93 = vrot.slane %v88, %v92
    %v111 = vunpack.c.l.b16 %v72
    %v112 = vunpack.c.l.b16 %v73
    %v113 = vunpack.c.l.b16 %v74
    %v114 = vunpack.c.l.b16 %v75
    %v115 = vunpack.c.l.b16 %v76
    %v116 = vunpack.c.l.b16 %v77
    %v117 = vunpack.c.l.b16 %v78
    %v118 = vunpack.c.l.b16 %v79
    %v119 = vunpack.c.l.b16 %v80
    %v120 = vunpack.c.l.b16 %v81
    %v121 = vunpack.c.l.b16 %v82
    %v122 = vunpack.c.l.b16 %v83
    %v123 = vunpack.c.l.b16 %v84
    %v124 = vunpack.c.l.b16 %v85
    %v125 = vunpack.c.l.b16 %v86
    %v126 = vunpack.c.l.b16 %v87
    %v127 = vpack.c.b16 %v112, %v111
    %v128 = vpack.c.b16 %v114, %v113
    %v129 = vpack.c.b16 %v116, %v115
    %v130 = vpack.c.b16 %v118, %v117
    %v131 = vpack.c.b16 %v120, %v119
    %v132 = vpack.c.b16 %v122, %v121
    %v133 = vpack.c.b16 %v124, %v123
    %v134 = vpack.c.b16 %v126, %v125
    %143 = vmatprep.subr.bf16.mxu0 0
    %144 = vmatpush1.bf16.msra.mxu0 %v127
    %145 = vmatprep.subr.bf16.mxu0 0
    %146 = vmatpush1.bf16.msra.mxu0 %v128
    %147 = vmatprep.subr.bf16.mxu0 0
    %148 = vmatpush1.bf16.msra.mxu0 %v129
    %149 = vmatprep.subr.bf16.mxu0 0
    %150 = vmatpush1.bf16.msra.mxu0 %v130
    %151 = vmatprep.subr.bf16.mxu0 0
    %152 = vmatpush1.bf16.msra.mxu0 %v131
    %153 = vmatprep.subr.bf16.mxu0 0
    %154 = vmatpush1.bf16.msra.mxu0 %v132
    %155 = vmatprep.subr.bf16.mxu0 0
    %156 = vmatpush1.bf16.msra.mxu0 %v133
    %157 = vmatprep.subr.bf16.mxu0 0
    %158 = vmatpush1.bf16.msra.mxu0 %v134
    %159 = vmatprep.subr.bf16.mxu0 0
    %160 = vmatpush1.bf16.msra.mxu0 0
    %161 = vmatprep.subr.bf16.mxu0 0
    %162 = vmatpush1.bf16.msra.mxu0 0
    %163 = vmatprep.subr.bf16.mxu0 0
    %164 = vmatpush1.bf16.msra.mxu0 0
    %165 = vmatprep.subr.bf16.mxu0 0
    %166 = vmatpush1.bf16.msra.mxu0 0
    %167 = vmatprep.subr.bf16.mxu0 0
    %168 = vmatpush1.bf16.msra.mxu0 0
    %169 = vmatprep.subr.bf16.mxu0 0
    %170 = vmatpush1.bf16.msra.mxu0 0
    %171 = vmatprep.subr.bf16.mxu0 0
    %172 = vmatpush1.bf16.msra.mxu0 0
    %173 = vmatprep.subr.bf16.mxu0 0
    %174 = vmatpush1.bf16.msra.mxu0 0
    %175 = vmatprep.mubr.bf16.mxu0 0
    %176 = vmatmul.mubr.bf16.gmra.mrb[0].mxu0 %v71
    %v177 = vpop.f32.mrb[0].mxu0
    %v178 = vadd.f32 %v93, %v177
    %v179 = vpop.f32.mrb[0].mxu0
    %v180 = vpop.f32.mrb[0].mxu0
    %v181 = vpop.f32.mrb[0].mxu0
    %182 = vdwg.mxu0
    %v183 = vxor.u32 %v178, 2147483648
    %v184 = vmul.f32 %v183, 1.442695
    %v185 = vpow.pop %v184
    %v186 = vadd.f32 %v185, 1.0
    %v187 = vrcp.pop %v186
    %v188 = vmul.f32 1.0, %v187
    %v189 = vmul.f32 %v188, 2.0
    %v190 = vsub.f32 %v189, 1.0
    %192 = vrot.lane.b32.xlu0 %v53, 32
    %v193 = vpop.permute.xlu0 %192
    %v195 = vmul.f32 %v188, %v193
    %197 = vrot.lane.b32.xlu0 %v190, 64
    %v198 = vpop.permute.xlu0 %197
    %v200 = vmul.f32 %v188, %v198
    %202 = vrot.lane.b32.xlu0 %v200, 32
    %v203 = vpop.permute.xlu0 %202
    %v205 = vadd.f32 %v195, %v203
    %v206 = vtanh.pop %v205
    %208 = vrot.lane.b32.xlu0 %v206, 64
    %v209 = vpop.permute.xlu0 %208
    %v211 = vmul.f32 %v188, %v209
    %213 = vrot.lane.b32.xlu0 %v211, 32
    %v214 = vpop.permute.xlu0 %213
    %216 = vst.msk [vmem:[#allocation2] sm:$0xff] %vm68, %v214
    %218 = vrot.lane.b32.xlu0 %v205, 96
    %v219 = vpop.permute.xlu0 %218
    %221 = vst.msk [vmem:[#allocation3] sm:$0xff] %vm68, %v219
    %v222 = vld [vmem:[%s5] sm:$0x1]
    %v224 = vlaneseq
    %v225 = vshrl.u32 %v224, 7
    %v226 = vsub.s32 0, %v225
    %v227 = vrot.slane %v222, %v226
    %228 = vrot.lane.b32.xlu0 %v227, 96
    %v229 = vpop.permute.xlu0 %228
    %v231 = vmul.f32 %v211, %v229
    %233 = vrot.lane.b32.xlu0 %v231, 32
    %v234 = vpop.permute.xlu0 %233
    %v236 = vsel %vm68, %v234, 0.0
    %237 = vadd.xlane.f32.xlu0 %v236
    %v238 = vpop.xlane.xlu0 %237
    %v239 = vld [vmem:[#allocation4] sm:$0x1]
    %v241 = vlaneseq
    %v242 = vshrl.u32 %v241, 7
    %v243 = vsub.s32 0, %v242
    %v244 = vrot.slane %v239, %v243
    %v246 = vadd.f32 %v238, %v244
    %v247 = vmax.f32 %v246, 0.0
    %v248 = vand.u32 2147483647, %v246
    %v249 = vsub.f32 0.0, %v248
    %v250 = vmul.f32 %v249, 1.442695
    %v251 = vpow.pop %v250
    %v252 = vadd.f32 %v251, 1.0
    %v253 = vlog2.pop %v252
    %v254 = vmul.f32 %v253, 0.6931472
    %v255 = vmul.f32 -0.5, %v251
    %v256 = vadd.f32 %v255, 1.0
    %v257 = vmul.f32 %v256, %v251
    %v258 = vand.u32 2147483647, %v251
    %vm259 = vcmp.lt.f32.partialorder %v258, 0.0004427343
    %v260 = vsel %vm259, %v257, %v254
    %v261 = vadd.f32 %v247, %v260
    %v262 = vsub.f32 0.0, %v261
    %v263 = vsub.f32 %v246, %v261
    %265 = vrot.lane.b32.xlu0 %v263, 1
    %v266 = vpop.permute.xlu0 %265
    %vm268 = vcmask 7168
    %v269 = vsel %vm268, %v262, %v266
    %271 = vrot.lane.b32.xlu0 %v269, 64
    %v272 = vpop.permute.xlu0 %271
    %v274 = vsel %vm68, %v214, %v205
    %vm275 = vcmask 523264
    %v276 = vsel %vm275, %v274, %v272
    %vm277 = vcmask 539648
    %v278 = vsel %vm277, %v276, 0.0
    %279 = vst [vmem:[%s7] sm:$0xff] %v278
    // Predicated region
    $region38: #{baseline_forward.1} parent=1 // pred_check
      _
    $region39: #{baseline_forward.1} parent=1 // pred_check_branch
      %281 = sbr.rel (0) target = $region41
    $region40: #{baseline_forward.1} parent=1 // pred_region
      _
    $region41: #{baseline_forward.1} parent=1 // pred_fallthru
      _
    // Predicated region
    $region42: #{baseline_forward.1} parent=1 // pred_check
      _
    $region43: #{baseline_forward.1} parent=1 // pred_check_branch
      %283 = sbr.rel (0) target = $region45
    $region44: #{baseline_forward.1} parent=1 // pred_region
      _
    $region45: #{baseline_forward.1} parent=1 // pred_fallthru
      _
    %284 = vsyncpa [#allocation6], 1

</llo_original>
